<compile_context>
chip_gen: v7x
topology: tpu7x:2x2x1
jax: 0.10.0
libtpu: 0.0.40
codegen_flags: <defaults>
</compile_context>

<pallas_src>
import math
import functools

import jax
import jax.numpy as jnp
from jax import lax
from jax.experimental import pallas as pl
from jax.experimental.pallas import tpu as pltpu

_EPS = 1e-12  # torch.nn.functional.normalize default eps

# Contract the last dim of both operands (x @ proto.T without materializing a transpose).
_DN_LAST = (((1,), (1,)), ((), ()))


def _nn_classifier_kernel(temp_ref, x_ref, p_ref, o_ref, *, metric, compute_dtype):
    """One B-tile of the NN-classifier forward.

    temp_ref: SMEM (1,) f32   -- temperature
    x_ref:    VMEM (TB, D)    -- feature tile
    p_ref:    VMEM (C, D)     -- class prototypes (grid-invariant block)
    o_ref:    VMEM (TB, C)    -- logits tile
    """
    temp = temp_ref[0]
    x = x_ref[...]
    p = p_ref[...]

    if metric == "cos":
        xf = x.astype(jnp.float32)
        pf = p.astype(jnp.float32)
        # F.normalize(v, dim=-1) == v / max(||v||, eps)  ==  v * min(rsqrt(||v||^2), 1/eps)
        inv_x = jnp.minimum(lax.rsqrt(jnp.sum(xf * xf, axis=-1, keepdims=True)), 1.0 / _EPS)
        inv_p = jnp.minimum(lax.rsqrt(jnp.sum(pf * pf, axis=-1, keepdims=True)), 1.0 / _EPS)
        xn = (xf * (inv_x * temp)).astype(compute_dtype)   # temp folded into the row scale
        pn = (pf * inv_p).astype(compute_dtype)
        logits = lax.dot_general(xn, pn, _DN_LAST, preferred_element_type=jnp.float32)
        o_ref[...] = logits.astype(o_ref.dtype)

    elif metric == "dot":
        logits = lax.dot_general(
            x.astype(compute_dtype), p.astype(compute_dtype), _DN_LAST,
            preferred_element_type=jnp.float32)
        o_ref[...] = (logits * temp).astype(o_ref.dtype)

    elif metric == "sqr":
        xf = x.astype(jnp.float32)
        pf = p.astype(jnp.float32)
        xp = lax.dot_general(
            x.astype(compute_dtype), p.astype(compute_dtype), _DN_LAST,
            preferred_element_type=jnp.float32)                           # (TB, C)
        x2 = jnp.sum(xf * xf, axis=-1, keepdims=True)                     # (TB, 1)
        pp = pf * pf
        ones_row = jnp.ones((1, pp.shape[-1]), jnp.float32)
        # ||p||^2 as a lane-dense (1, C) row straight off the MXU (no tiny XLU transpose).
        p2 = lax.dot_general(ones_row, pp, _DN_LAST, preferred_element_type=jnp.float32)
        o_ref[...] = ((2.0 * xp - x2 - p2) * temp).astype(o_ref.dtype)

    else:
        raise ValueError(f"unknown metric: {metric}")


def _auto_tile_b(B, D, C, x_bytes, p_bytes, budget_bytes=28 * 1024 * 1024):
    """Largest B-tile (multiple of 8, <= 512) whose double-buffered working set fits the budget."""
    tb = min(max(8, -(-B // 8) * 8), 512)

    def vmem_need(t):
        # 2x x-tile buffers + 2x f32 output-tile buffers + (conservatively 2x) resident proto.
        return 2 * t * D * x_bytes + 2 * t * C * 4 + 2 * C * D * p_bytes

    while tb > 8 and vmem_need(tb) > budget_bytes:
        tb = max(8, (tb // 2) // 8 * 8)
    return tb


def nn_classifier_forward(x, proto, temp, metric="cos", tile_b=None):
    """Pallas wrapper. x: (B, D), proto: (C, D), temp: scalar -> logits (B, C) f32."""
    B, D = x.shape
    C, D2 = proto.shape
    assert D == D2, "feature dim mismatch"

    x_bytes = jnp.dtype(x.dtype).itemsize
    p_bytes = jnp.dtype(proto.dtype).itemsize

    if tile_b is None:
        tile_b = _auto_tile_b(B, D, C, x_bytes, p_bytes)
    tile_b = max(8, (int(tile_b) // 8) * 8)
    tile_b = min(tile_b, max(8, -(-B // 8) * 8))

    nb = pl.cdiv(B, tile_b)
    B_pad = nb * tile_b
    if B_pad != B:
        # Zero padding is safe: cos uses the eps clamp (no inf*0), dot/sqr pad rows are sliced off.
        x = jnp.pad(x, ((0, B_pad - B), (0, 0)))

    if x.dtype == jnp.bfloat16 and proto.dtype == jnp.bfloat16:
        compute_dtype = jnp.bfloat16          # keep bf16 operands on the MXU
    else:
        compute_dtype = jnp.float32

    temp_arr = jnp.asarray(temp, dtype=jnp.float32).reshape((1,))
    kernel = functools.partial(_nn_classifier_kernel, metric=metric, compute_dtype=compute_dtype)

    out = pl.pallas_call(
        kernel,
        grid=(nb,),
        in_specs=[
            pl.BlockSpec(memory_space=pltpu.SMEM),             # temp scalar
            pl.BlockSpec((tile_b, D), lambda i: (i, 0)),       # x tile
            pl.BlockSpec((C, D), lambda i: (0, 0)),            # proto (grid-invariant)
        ],
        out_specs=pl.BlockSpec((tile_b, C), lambda i: (i, 0)),
        out_shape=jax.ShapeDtypeStruct((B_pad, C), jnp.float32),
        compiler_params=pltpu.CompilerParams(
            dimension_semantics=("parallel",),                 # megacore sharding on v7x
            vmem_limit_bytes=48 * 1024 * 1024,                 # raise 16/32 MiB defaults, < v7x 64 MiB
        ),
    )(temp_arr, x, proto)

    return out[:B] if B_pad != B else out


def init_nn_classifier_params(key, in_dim, n_classes, metric="cos", temp=None):
    """Deterministic re-implementation of NNClassifier.__init__.

    proto ~ kaiming_uniform_(a=sqrt(5)) on shape (n_classes, in_dim):
      fan_in = in_dim, gain = sqrt(2/(1+5)) = sqrt(1/3),
      bound  = gain * sqrt(3/fan_in) = 1/sqrt(fan_in)
    temp: if None and metric == 'cos' -> 10.0 (learnable Parameter in torch), else 1.0.
    """
    bound = 1.0 / math.sqrt(in_dim)
    proto = jax.random.uniform(
        key, (n_classes, in_dim), dtype=jnp.float32, minval=-bound, maxval=bound
    )
    if temp is None:
        temp = 10.0 if metric == "cos" else 1.0
    return proto, temp


def reference_forward(x, proto, temp, metric="cos"):
    """Plain-JAX reference of utils.compute_logits for the 2-D case."""
    x = x.astype(jnp.float32)
    proto = proto.astype(jnp.float32)
    if metric == "cos":
        xn = x / jnp.maximum(jnp.linalg.norm(x, axis=-1, keepdims=True), _EPS)
        pn = proto / jnp.maximum(jnp.linalg.norm(proto, axis=-1, keepdims=True), _EPS)
        logits = xn @ pn.T
    elif metric == "dot":
        logits = x @ proto.T
    elif metric == "sqr":
        logits = -jnp.sum((x[:, None, :] - proto[None, :, :]) ** 2, axis=-1)
    return logits * temp


if __name__ == "__main__":
    key = jax.random.PRNGKey(0)
    k_proto, k_x = jax.random.split(key)

    # Small but tiling-exercising shapes: B=80 with tile_b=32 -> grid of 3 tiles + row padding.
    B, in_dim, n_classes = 80, 256, 64
    x = jax.random.normal(k_x, (B, in_dim), dtype=jnp.float32)

    for metric in ("cos", "dot", "sqr"):
        proto, temp = init_nn_classifier_params(k_proto, in_dim, n_classes, metric=metric)
        logits = nn_classifier_forward(x, proto, temp, metric=metric, tile_b=32)
        logits = jax.block_until_ready(logits)

        ref = reference_forward(x, proto, temp, metric=metric)
        assert logits.shape == (B, n_classes)
        assert jnp.allclose(logits, ref, atol=1e-3, rtol=1e-4), f"mismatch vs reference ({metric})"

    print("KERNEL_OK")
</pallas_src>

<mosaic_0001>
module attributes {stable_mosaic.version = 11 : i64} {
  func.func @_nn_classifier_kernel(%arg0: i32, %arg1: memref<1xf32, #tpu.memory_space<smem>>, %arg2: memref<32x256xf32, #tpu.memory_space<vmem>>, %arg3: memref<64x256xf32, #tpu.memory_space<vmem>>, %arg4: memref<32x64xf32, #tpu.memory_space<vmem>>) attributes {dimension_semantics = [#tpu.dimension_semantics<parallel>], iteration_bounds = array<i64: 3>, scalar_prefetch = 0 : i64, scratch_operands = 0 : i64, tpu.core_type = #tpu.core_type<tc>, window_params = [{transform_indices = @transform_0, window_bounds = array<i64: 1>}, {transform_indices = @transform_1, window_bounds = array<i64: 32, 256>}, {pipeline_mode = #tpu.pipeline_mode<synchronous>, transform_indices = @transform_2, window_bounds = array<i64: 64, 256>}, {transform_indices = @transform_3, window_bounds = array<i64: 32, 64>}]} {
    %c0 = arith.constant 0 : index
    %0 = memref.load %arg1[%c0] : memref<1xf32, #tpu.memory_space<smem>>
    %c0_0 = arith.constant 0 : index
    %c0_1 = arith.constant 0 : index
    %1 = vector.load %arg2[%c0_0, %c0_1] : memref<32x256xf32, #tpu.memory_space<vmem>>, vector<32x256xf32>
    %c0_2 = arith.constant 0 : index
    %c0_3 = arith.constant 0 : index
    %2 = vector.load %arg3[%c0_2, %c0_3] : memref<64x256xf32, #tpu.memory_space<vmem>>, vector<64x256xf32>
    %3 = arith.mulf %1, %1 : vector<32x256xf32>
    %cst = arith.constant dense<0.000000e+00> : vector<32xf32>
    %4 = vector.multi_reduction <add>, %3, %cst [1] : vector<32x256xf32> to vector<32xf32>
    %5 = vector.shape_cast %4 : vector<32xf32> to vector<32x1xf32>
    %6 = math.rsqrt %5 : vector<32x1xf32>
    %cst_4 = arith.constant 9.99999995E+11 : f32
    %7 = vector.broadcast %cst_4 : f32 to vector<32x1xf32>
    %8 = arith.minimumf %6, %7 : vector<32x1xf32>
    %9 = arith.mulf %2, %2 : vector<64x256xf32>
    %cst_5 = arith.constant dense<0.000000e+00> : vector<64xf32>
    %10 = vector.multi_reduction <add>, %9, %cst_5 [1] : vector<64x256xf32> to vector<64xf32>
    %11 = vector.shape_cast %10 : vector<64xf32> to vector<64x1xf32>
    %12 = math.rsqrt %11 : vector<64x1xf32>
    %cst_6 = arith.constant 9.99999995E+11 : f32
    %13 = vector.broadcast %cst_6 : f32 to vector<64x1xf32>
    %14 = arith.minimumf %12, %13 : vector<64x1xf32>
    %15 = vector.broadcast %0 : f32 to vector<32x1xf32>
    %16 = arith.mulf %8, %15 : vector<32x1xf32>
    %17 = vector.broadcast %16 : vector<32x1xf32> to vector<32x256xf32>
    %18 = arith.mulf %1, %17 : vector<32x256xf32>
    %19 = vector.broadcast %14 : vector<64x1xf32> to vector<64x256xf32>
    %20 = arith.mulf %2, %19 : vector<64x256xf32>
    %cst_7 = arith.constant dense<0.000000e+00> : vector<32x64xf32>
    %21 = tpu.matmul %18, %20, %cst_7 {dimension_numbers = #tpu.dot_dimension_numbers<[1], [1], [0], [0], [0, 0, 1, 0], [], []>} : vector<32x256xf32>, vector<64x256xf32>, vector<32x64xf32> -> vector<32x64xf32>
    %c0_8 = arith.constant 0 : index
    %c0_9 = arith.constant 0 : index
    %22 = vector.load %arg4[%c0_8, %c0_9] : memref<32x64xf32, #tpu.memory_space<vmem>>, vector<32x64xf32>
    tpu.vector_store %arg4[%c0_8, %c0_9], %21 {strides = array<i32>} : memref<32x64xf32, #tpu.memory_space<vmem>>, vector<32x64xf32>,
    return
  }
  func.func @transform_0(%arg0: i32) -> i32 {
    %c0_i32 = arith.constant 0 : i32
    %c0_i32_0 = arith.constant 0 : i32
    return %c0_i32 : i32
  }
  func.func @transform_1(%arg0: i32) -> (i32, i32) {
    %c0_i32 = arith.constant 0 : i32
    %c0_i32_0 = arith.constant 0 : i32
    return %arg0, %c0_i32 : i32, i32
  }
  func.func @transform_2(%arg0: i32) -> (i32, i32) {
    %c0_i32 = arith.constant 0 : i32
    %c0_i32_0 = arith.constant 0 : i32
    %c0_i32_1 = arith.constant 0 : i32
    return %c0_i32, %c0_i32_0 : i32, i32
  }
  func.func @transform_3(%arg0: i32) -> (i32, i32) {
    %c0_i32 = arith.constant 0 : i32
    %c0_i32_0 = arith.constant 0 : i32
    return %arg0, %c0_i32 : i32, i32
  }
}

</mosaic_0001>

<llo_original>
// kernel: tpu_custom_call.1
$region0: #{tpu_custom_call.1}
  #allocation0 [shape = 'u32[]', space=smem, size = 0x4, offset = 0x4, fixed_abs, tag = 'smem constant byte address 0x4 - core index']
  #allocation1 [shape = 'u32[144,128]{1,0:T(1,128)}', space=vmem, size = 0x12000, scoped, tag = 'internal scratch']
  #allocation2 [shape = 'f32[1]{0:T(128)S(6)}', space=smem, size = 0x200, scoped, tag = 'scoped memory for tpu_custom_call.1']
  %s0 = inlined_call_operand.<no memory space> [shape: f32[1], index: 0, kind: input, shape index: {}]
  %s1 = inlined_call_operand.hbm [shape: f32[96,256], index: 1, kind: input, shape index: {}]
  %s2 = inlined_call_operand.hbm [shape: f32[64,256], index: 2, kind: input, shape index: {}]
  %s3 = inlined_call_operand.vmem [shape: f32[96,64], index: 3, kind: output, shape index: {}]
  %s4 = sld [smem:[#allocation0]]
  $region53: #{tpu_custom_call.1} parent=0
    _
  %s6 = ssub.s32 1, %s4
  %s7 = scalar_select 0, %s6, %s4
  %8 = sst [smem:[#allocation2]] %s0
  $region1: #{tpu_custom_call.1} parent=0
    #allocation3 [shape = 'u8[65536]{0}', space=vmem, size = 0x10000, scoped, tag = 'input window, operand 1']
    #allocation4 [shape = 's32[2]{0}', space=sflag, size = 0x8, scoped, tag = 'scoped memory for tpu_custom_call.1']
    #allocation5 [shape = 'u8[65536]{0}', space=vmem, size = 0x10000, scoped, tag = 'input window, operand 2, single buffered']
    #allocation6 [shape = 's32[1]{0}', space=sflag, size = 0x4, scoped, tag = 'scoped memory for tpu_custom_call.1']
    %9 = vsyncpa [#allocation4], 0
    %s10 = scalar_lea.sflag [#allocation4], 1
    %11 = vsyncpa %s10, 0
    %12 = vsyncpa [#allocation6], 0
    loop: start=0, step=1, limit=5
    $region2: #{tpu_custom_call.1} parent=1 // loop_pre_header
      _
    $region3: #{tpu_custom_call.1} parent=1 // loop_header
      %s14 = sphi 0, %s18
      %p15 = scmp.ge.s32.totalorder %s14, 5
      %s22 = sphi 0, %s22
      %s24 = sphi 0, %s22
      %s25 = sphi 0, %s24
      %s39 = sphi 0, %s25
      %s45 = sphi 0, %s47
      %s48 = sphi 0, %s45
      %s49 = sphi 0, %s48
      %s65 = sphi 0, %s49
      %s69 = sphi 0, %s69
      %s71 = sphi 0, %s69
      %s72 = sphi 0, %s71
      %s86 = sphi 0, %s72
      %s92 = sphi 0, %s94
      %s95 = sphi 0, %s92
      %s96 = sphi 0, %s95
      %s112 = sphi 0, %s96
    $region4: #{tpu_custom_call.1} parent=1 // loop_header_branch
      %17 = sbr.rel (%p15) target = $region8
    $region5: #{tpu_custom_call.1} parent=1 // loop_body
      %s19 = ssub.s32 %s14, 1
      %s20 = ssub.s32 %s14, 2
      %s21 = sadd.s32 %s14, 1
      %s23 = sadd.s32 %s22, 1
      %p26 = scmp.eq.s32.totalorder %s14, 2
      %p27 = scmp.ne.s32.totalorder %s22, %s24
      %p28 = scmp.eq.s32.totalorder %s14, 0
      %p29 = por %p27, %p28
      %p30 = scmp.ne.s32.totalorder %s22, %s24
      %p31 = scmp.eq.s32.totalorder %s19, 2
      %p32 = por %p30, %p31
      %p33 = scmp.ne.s32.totalorder %s24, %s25
      %p34 = scmp.eq.s32.totalorder %s19, 0
      %p35 = por %p33, %p34
      %p36 = scmp.ne.s32.totalorder %s24, %s25
      %p37 = scmp.eq.s32.totalorder %s20, 2
      %p38 = por %p36, %p37
      %p40 = scmp.ne.s32.totalorder %s25, %s39
      %p41 = scmp.eq.s32.totalorder %s20, 0
      %p42 = por %p40, %p41
      %s43 = ssub.s32 %s14, %s21
      %p44 = scmp.eq.s32.totalorder %s43, 0
      %s46 = sadd.s32 %s45, 1
      %s47 = scalar_select %p44, %s45, %s46
      %p50 = pneg %p44
      %p51 = scmp.eq.s32.totalorder %s14, 2
      %p52 = por %p50, %p51
      %p53 = scmp.ne.s32.totalorder %s45, %s48
      %p54 = scmp.eq.s32.totalorder %s14, 0
      %p55 = por %p53, %p54
      %p56 = scmp.ne.s32.totalorder %s45, %s48
      %p57 = scmp.eq.s32.totalorder %s19, 2
      %p58 = por %p56, %p57
      %p59 = scmp.ne.s32.totalorder %s48, %s49
      %p60 = scmp.eq.s32.totalorder %s19, 0
      %p61 = por %p59, %p60
      %p62 = scmp.ne.s32.totalorder %s48, %s49
      %p63 = scmp.eq.s32.totalorder %s20, 2
      %p64 = por %p62, %p63
      %p66 = scmp.ne.s32.totalorder %s49, %s65
      %p67 = scmp.eq.s32.totalorder %s20, 0
      %p68 = por %p66, %p67
      %s70 = sadd.s32 %s69, 1
      %p73 = scmp.eq.s32.totalorder %s14, 2
      %p74 = scmp.ne.s32.totalorder %s69, %s71
      %p75 = scmp.eq.s32.totalorder %s14, 0
      %p76 = por %p74, %p75
      %p77 = scmp.ne.s32.totalorder %s69, %s71
      %p78 = scmp.eq.s32.totalorder %s19, 2
      %p79 = por %p77, %p78
      %p80 = scmp.ne.s32.totalorder %s71, %s72
      %p81 = scmp.eq.s32.totalorder %s19, 0
      %p82 = por %p80, %p81
      %p83 = scmp.ne.s32.totalorder %s71, %s72
      %p84 = scmp.eq.s32.totalorder %s20, 2
      %p85 = por %p83, %p84
      %p87 = scmp.ne.s32.totalorder %s72, %s86
      %p88 = scmp.eq.s32.totalorder %s20, 0
      %p89 = por %p87, %p88
      %s90 = ssub.s32 %s14, %s21
      %p91 = scmp.eq.s32.totalorder %s90, 0
      %s93 = sadd.s32 %s92, 1
      %s94 = scalar_select %p91, %s92, %s93
      %p97 = pneg %p91
      %p98 = scmp.eq.s32.totalorder %s14, 2
      %p99 = por %p97, %p98
      %p100 = scmp.ne.s32.totalorder %s92, %s95
      %p101 = scmp.eq.s32.totalorder %s14, 0
      %p102 = por %p100, %p101
      %p103 = scmp.ne.s32.totalorder %s92, %s95
      %p104 = scmp.eq.s32.totalorder %s19, 2
      %p105 = por %p103, %p104
      %p106 = scmp.ne.s32.totalorder %s95, %s96
      %p107 = scmp.eq.s32.totalorder %s19, 0
      %p108 = por %p106, %p107
      %p109 = scmp.ne.s32.totalorder %s95, %s96
      %p110 = scmp.eq.s32.totalorder %s20, 2
      %p111 = por %p109, %p110
      %p113 = scmp.ne.s32.totalorder %s96, %s112
      %p114 = scmp.eq.s32.totalorder %s20, 0
      %p115 = por %p113, %p114
      %p116 = scmp.le.s32.totalorder 1, %s14
      %p117 = scmp.lt.s32.totalorder %s14, 4
      %p118 = pnand %p116, %p117
      %p119 = pneg %p118
      // Predicated region
      $region9: #{tpu_custom_call.1} parent=5 // pred_check
        _
      $region10: #{tpu_custom_call.1} parent=5 // pred_check_branch
        %121 = sbr.rel (%p118) target = $region12
      $region11: #{tpu_custom_call.1} parent=5 // pred_region
        %s122 = ssub.s32 %s14, 1
        // Predicated region
        $region13: #{tpu_custom_call.1} parent=11 // pred_check
          %p123 = pneg %p35
        $region14: #{tpu_custom_call.1} parent=11 // pred_check_branch
          %125 = sbr.rel (%p123) target = $region16
        $region15: #{tpu_custom_call.1} parent=11 // pred_region
          _
        $region16: #{tpu_custom_call.1} parent=11 // pred_fallthru
          _
        // Predicated region
        $region17: #{tpu_custom_call.1} parent=11 // pred_check
          %p126 = pneg %p82
        $region18: #{tpu_custom_call.1} parent=11 // pred_check_branch
          %128 = sbr.rel (%p126) target = $region20
        $region19: #{tpu_custom_call.1} parent=11 // pred_region
          %s130 = ssub.s32 2048, 2048
          %131 = vsyncadd [#allocation6], %s130
          %s132 = sshll.u32 [#allocation5], 4
          %s133 = int_to_ptr.vmem [resolvable:$true] %s132
          %138 = dma.hbm_to_vmem [thread:$0]  %s2, 2048, %s133, [#allocation6], 256, 256, 16
        $region20: #{tpu_custom_call.1} parent=11 // pred_fallthru
          _
      $region12: #{tpu_custom_call.1} parent=5 // pred_fallthru
        _
      %p139 = scmp.lt.s32.totalorder %s14, 3
      // Predicated region
      $region21: #{tpu_custom_call.1} parent=5 // pred_check
        %p140 = pneg %p139
      $region22: #{tpu_custom_call.1} parent=5 // pred_check_branch
        %142 = sbr.rel (%p140) target = $region24
      $region23: #{tpu_custom_call.1} parent=5 // pred_region
        // Predicated region
        $region25: #{tpu_custom_call.1} parent=23 // pred_check
          %p143 = pneg %p55
        $region26: #{tpu_custom_call.1} parent=23 // pred_check_branch
          %145 = sbr.rel (%p143) target = $region28
        $region27: #{tpu_custom_call.1} parent=23 // pred_region
          %s146 = sand.u32 %s45, 1
          %s147 = scalar_lea.sflag [#allocation4], %s146
          %s148 = sand.u32 %s45, 1
          %s149 = smul.addr %s148, 64
          %s150 = scalar_lea.vmem [#allocation3], %s149
          %s151 = smul.u32 4, %s14
          %s153 = ssub.s32 1024, 1024
          %154 = vsyncadd %s147, %s153
          %s155 = smul.addr %s151, 2
          %s156 = smul.addr %s155, 128
          %s157 = scalar_lea.hbm %s1, %s156
          %s158 = sshll.u32 %s150, 4
          %s159 = int_to_ptr.vmem [resolvable:$true] %s158
          %164 = dma.hbm_to_vmem [thread:$0]  %s157, 1024, %s159, %s147, 256, 256, 16
        $region28: #{tpu_custom_call.1} parent=23 // pred_fallthru
          _
      $region24: #{tpu_custom_call.1} parent=5 // pred_fallthru
        _
      %p165 = scmp.le.s32.totalorder 1, %s14
      %p166 = scmp.lt.s32.totalorder %s14, 4
      %p167 = pnand %p165, %p166
      %p168 = pneg %p167
      // Predicated region
      $region29: #{tpu_custom_call.1} parent=5 // pred_check
        _
      $region30: #{tpu_custom_call.1} parent=5 // pred_check_branch
        %170 = sbr.rel (%p167) target = $region32
      $region31: #{tpu_custom_call.1} parent=5 // pred_region
        %s171 = ssub.s32 %s14, 1
        %s172 = sand.u32 %s48, 1
        %s173 = scalar_lea.sflag [#allocation4], %s172
        %s174 = sand.u32 %s48, 1
        %s175 = smul.addr %s174, 64
        %s176 = scalar_lea.vmem [#allocation3], %s175
        // Predicated region
        $region33: #{tpu_custom_call.1} parent=31 // pred_check
          %p177 = pneg %p61
        $region34: #{tpu_custom_call.1} parent=31 // pred_check_branch
          %179 = sbr.rel (%p177) target = $region36
        $region35: #{tpu_custom_call.1} parent=31 // pred_region
          %180 = dma.done %s173, 1024
        $region36: #{tpu_custom_call.1} parent=31 // pred_fallthru
          _
        // Predicated region
        $region37: #{tpu_custom_call.1} parent=31 // pred_check
          %p181 = pneg %p82
        $region38: #{tpu_custom_call.1} parent=31 // pred_check_branch
          %183 = sbr.rel (%p181) target = $region40
        $region39: #{tpu_custom_call.1} parent=31 // pred_region
          %184 = dma.done [#allocation6], 2048
        $region40: #{tpu_custom_call.1} parent=31 // pred_fallthru
          _
        %p185 = pneg %p35
        %p186 = pneg %p32
        %s187 = sand.u32 %s48, 1
        %s188 = scalar_lea.sflag [#allocation4], %s187
        %s189 = sand.u32 %s48, 1
        %s190 = smul.addr %s189, 64
        %s191 = scalar_lea.vmem [#allocation3], %s190
        %p192 = pneg %p61
        %p193 = pneg %p58
        %p194 = pneg %p82
        %p195 = pneg %p79
        %p196 = pneg %p108
        %p197 = pneg %p105
        %s198 = smul.u32 4, %s19
        %p199 = scmp.lt.s32.totalorder %s198, 11
        %s200 = scalar_select %p199, %s198, 11
        %s201 = smul.addr %s200, 8
        %s202 = scalar_lea.vmem %s3, %s201
        %s203 = smul.u32 4, %s19
        %s204 = smul.u32 4, %s19
        %p205 = scmp.lt.s32.totalorder %s204, 11
        %s206 = scalar_select %p205, %s204, 11
        %s207 = smul.addr %s206, 8
        %s208 = scalar_lea.vmem %s3, %s207
        %s209 = smul.u32 4, %s19
        %s210 = sld [smem:[#allocation2]]
        %v211 = vld [vmem:[%s176] sm:$0xff]
        %v212 = vld [vmem:[%s176 + $0x8] sm:$0xff]
        %v213 = vld [vmem:[%s176 + $0x10] sm:$0xff]
        %v214 = vld [vmem:[%s176 + $0x18] sm:$0xff]
        %v215 = vld [vmem:[%s176 + $0x20] sm:$0xff]
        %v216 = vld [vmem:[%s176 + $0x28] sm:$0xff]
        %v217 = vld [vmem:[%s176 + $0x30] sm:$0xff]
        %v218 = vld [vmem:[%s176 + $0x38] sm:$0xff]
        %v219 = vld [vmem:[#allocation5] sm:$0xff]
        %v220 = vld [vmem:[#allocation5 + $0x8] sm:$0xff]
        %v221 = vld [vmem:[#allocation5 + $0x10] sm:$0xff]
        %v222 = vld [vmem:[#allocation5 + $0x18] sm:$0xff]
        %v223 = vld [vmem:[#allocation5 + $0x20] sm:$0xff]
        %v224 = vld [vmem:[#allocation5 + $0x28] sm:$0xff]
        %v225 = vld [vmem:[#allocation5 + $0x30] sm:$0xff]
        %v226 = vld [vmem:[#allocation5 + $0x38] sm:$0xff]
        %v227 = vld [vmem:[#allocation5 + $0x40] sm:$0xff]
        %v228 = vld [vmem:[#allocation5 + $0x48] sm:$0xff]
        %v229 = vld [vmem:[#allocation5 + $0x50] sm:$0xff]
        %v230 = vld [vmem:[#allocation5 + $0x58] sm:$0xff]
        %v231 = vld [vmem:[#allocation5 + $0x60] sm:$0xff]
        %v232 = vld [vmem:[#allocation5 + $0x68] sm:$0xff]
        %v233 = vld [vmem:[#allocation5 + $0x70] sm:$0xff]
        %v234 = vld [vmem:[#allocation5 + $0x78] sm:$0xff]
        %v235 = vmul.f32 %v211, %v211
        %v236 = vmul.f32 %v212, %v212
        %v237 = vmul.f32 %v213, %v213
        %v238 = vmul.f32 %v214, %v214
        %v239 = vmul.f32 %v215, %v215
        %v240 = vmul.f32 %v216, %v216
        %v241 = vmul.f32 %v217, %v217
        %v242 = vmul.f32 %v218, %v218
        %v243 = vadd.f32 %v235, %v236
        %244 = vadd.xlane.f32.xlu0 %v243
        %v245 = vpop.xlane.xlu0 %244
        %v246 = vadd.f32 %v237, %v238
        %247 = vadd.xlane.f32.xlu0 %v246
        %v248 = vpop.xlane.xlu0 %247
        %v249 = vadd.f32 %v239, %v240
        %250 = vadd.xlane.f32.xlu0 %v249
        %v251 = vpop.xlane.xlu0 %250
        %v252 = vadd.f32 %v241, %v242
        %253 = vadd.xlane.f32.xlu0 %v252
        %v254 = vpop.xlane.xlu0 %253
        %v255 = vrsqrt.pop %v245
        %v256 = vrsqrt.pop %v248
        %v257 = vrsqrt.pop %v251
        %v258 = vrsqrt.pop %v254
        %v259 = vmin.f32 %v255, 1e+12
        %v260 = vmin.f32 %v256, 1e+12
        %v261 = vmin.f32 %v257, 1e+12
        %v262 = vmin.f32 %v258, 1e+12
        %v263 = vmul.f32 %v219, %v219
        %v264 = vmul.f32 %v220, %v220
        %v265 = vmul.f32 %v221, %v221
        %v266 = vmul.f32 %v222, %v222
        %v267 = vmul.f32 %v223, %v223
        %v268 = vmul.f32 %v224, %v224
        %v269 = vmul.f32 %v225, %v225
        %v270 = vmul.f32 %v226, %v226
        %v271 = vmul.f32 %v227, %v227
        %v272 = vmul.f32 %v228, %v228
        %v273 = vmul.f32 %v229, %v229
        %v274 = vmul.f32 %v230, %v230
        %v275 = vmul.f32 %v231, %v231
        %v276 = vmul.f32 %v232, %v232
        %v277 = vmul.f32 %v233, %v233
        %v278 = vmul.f32 %v234, %v234
        %v279 = vadd.f32 %v263, %v264
        %280 = vadd.xlane.f32.xlu0 %v279
        %v281 = vpop.xlane.xlu0 %280
        %v282 = vadd.f32 %v265, %v266
        %283 = vadd.xlane.f32.xlu0 %v282
        %v284 = vpop.xlane.xlu0 %283
        %v285 = vadd.f32 %v267, %v268
        %286 = vadd.xlane.f32.xlu0 %v285
        %v287 = vpop.xlane.xlu0 %286
        %v288 = vadd.f32 %v269, %v270
        %289 = vadd.xlane.f32.xlu0 %v288
        %v290 = vpop.xlane.xlu0 %289
        %v291 = vadd.f32 %v271, %v272
        %292 = vadd.xlane.f32.xlu0 %v291
        %v293 = vpop.xlane.xlu0 %292
        %v294 = vadd.f32 %v273, %v274
        %295 = vadd.xlane.f32.xlu0 %v294
        %v296 = vpop.xlane.xlu0 %295
        %v297 = vadd.f32 %v275, %v276
        %298 = vadd.xlane.f32.xlu0 %v297
        %v299 = vpop.xlane.xlu0 %298
        %v300 = vadd.f32 %v277, %v278
        %301 = vadd.xlane.f32.xlu0 %v300
        %v302 = vpop.xlane.xlu0 %301
        %v303 = vrsqrt.pop %v281
        %v304 = vrsqrt.pop %v284
        %v305 = vrsqrt.pop %v287
        %v306 = vrsqrt.pop %v290
        %v307 = vrsqrt.pop %v293
        %v308 = vrsqrt.pop %v296
        %v309 = vrsqrt.pop %v299
        %v310 = vrsqrt.pop %v302
        %v311 = vmin.f32 %v303, 1e+12
        %v312 = vmin.f32 %v304, 1e+12
        %v313 = vmin.f32 %v305, 1e+12
        %v314 = vmin.f32 %v306, 1e+12
        %v315 = vmin.f32 %v307, 1e+12
        %v316 = vmin.f32 %v308, 1e+12
        %v317 = vmin.f32 %v309, 1e+12
        %v318 = vmin.f32 %v310, 1e+12
        %v319 = vstv %s210
        %v320 = vmul.f32 %v259, %v319
        %v321 = vmul.f32 %v260, %v319
        %v322 = vmul.f32 %v261, %v319
        %v323 = vmul.f32 %v262, %v319
        %v324 = vmul.f32 %v211, %v320
        %v325 = vmul.f32 %v212, %v320
        %v326 = vmul.f32 %v213, %v321
        %v327 = vmul.f32 %v214, %v321
        %v328 = vmul.f32 %v215, %v322
        %v329 = vmul.f32 %v216, %v322
        %v330 = vmul.f32 %v217, %v323
        %v331 = vmul.f32 %v218, %v323
        %v332 = vmul.f32 %v219, %v311
        %v333 = vmul.f32 %v220, %v311
        %v334 = vmul.f32 %v221, %v312
        %v335 = vmul.f32 %v222, %v312
        %v336 = vmul.f32 %v223, %v313
        %v337 = vmul.f32 %v224, %v313
        %v338 = vmul.f32 %v225, %v314
        %v339 = vmul.f32 %v226, %v314
        %v340 = vmul.f32 %v227, %v315
        %v341 = vmul.f32 %v228, %v315
        %v342 = vmul.f32 %v229, %v316
        %v343 = vmul.f32 %v230, %v316
        %v344 = vmul.f32 %v231, %v317
        %v345 = vmul.f32 %v232, %v317
        %v346 = vmul.f32 %v233, %v318
        %v347 = vmul.f32 %v234, %v318
        %348 = vmatprep.subr.mxu0 %v333
        %349 = vmatpush1.xpose.msra.mxu0 %v332
        %350 = vmatprep.subr.mxu0 %v335
        %351 = vmatpush1.xpose.msra.mxu0 %v334
        %352 = vmatprep.subr.mxu0 %v337
        %353 = vmatpush1.xpose.msra.mxu0 %v336
        %354 = vmatprep.subr.mxu0 %v339
        %355 = vmatpush1.xpose.msra.mxu0 %v338
        %356 = vmatprep.subr.mxu0 %v341
        %357 = vmatpush1.xpose.msra.mxu0 %v340
        %358 = vmatprep.subr.mxu0 %v343
        %359 = vmatpush1.xpose.msra.mxu0 %v342
        %360 = vmatprep.subr.mxu0 %v345
        %361 = vmatpush1.xpose.msra.mxu0 %v344
        %362 = vmatprep.subr.mxu0 %v347
        %363 = vmatpush1.xpose.msra.mxu0 %v346
        %364 = vmatprep.subr.mxu0 0.0
        %365 = vmatpush1.xpose.msra.mxu0 0.0
        %366 = vmatprep.subr.mxu0 0.0
        %367 = vmatpush1.xpose.msra.mxu0 0.0
        %368 = vmatprep.subr.mxu0 0.0
        %369 = vmatpush1.xpose.msra.mxu0 0.0
        %370 = vmatprep.subr.mxu0 0.0
        %371 = vmatpush1.xpose.msra.mxu0 0.0
        %372 = vmatprep.subr.mxu0 0.0
        %373 = vmatpush1.xpose.msra.mxu0 0.0
        %374 = vmatprep.subr.mxu0 0.0
        %375 = vmatpush1.xpose.msra.mxu0 0.0
        %376 = vmatprep.subr.mxu0 0.0
        %377 = vmatpush1.xpose.msra.mxu0 0.0
        %378 = vmatprep.subr.mxu0 0.0
        %379 = vmatpush1.xpose.msra.mxu0 0.0
        %380 = vmatprep.subr.mxu0 0.0
        %381 = vmatpush1.xpose.msra.mxu0 0.0
        %382 = vmatprep.subr.mxu0 0.0
        %383 = vmatpush1.xpose.msra.mxu0 0.0
        %384 = vmatprep.subr.mxu0 0.0
        %385 = vmatpush1.xpose.msra.mxu0 0.0
        %386 = vmatprep.subr.mxu0 0.0
        %387 = vmatpush1.xpose.msra.mxu0 0.0
        %388 = vmatprep.subr.mxu0 0.0
        %389 = vmatpush1.xpose.msra.mxu0 0.0
        %390 = vmatprep.subr.mxu0 0.0
        %391 = vmatpush1.xpose.msra.mxu0 0.0
        %392 = vmatprep.subr.mxu0 0.0
        %393 = vmatpush1.xpose.msra.mxu0 0.0
        %394 = vmatprep.subr.mxu0 0.0
        %395 = vmatpush1.xpose.msra.mxu0 0.0
        %396 = vmatprep.subr.mxu0 0.0
        %397 = vmatpush1.xpose.msra.mxu0 0.0
        %398 = vmatprep.subr.mxu0 0.0
        %399 = vmatpush1.xpose.msra.mxu0 0.0
        %400 = vmatprep.subr.mxu0 0.0
        %401 = vmatpush1.xpose.msra.mxu0 0.0
        %402 = vmatprep.subr.mxu0 0.0
        %403 = vmatpush1.xpose.msra.mxu0 0.0
        %404 = vmatprep.subr.mxu0 0.0
        %405 = vmatpush1.xpose.msra.mxu0 0.0
        %406 = vmatprep.subr.mxu0 0.0
        %407 = vmatpush1.xpose.msra.mxu0 0.0
        %408 = vmatprep.subr.mxu0 0.0
        %409 = vmatpush1.xpose.msra.mxu0 0.0
        %410 = vmatprep.subr.mxu0 0.0
        %411 = vmatpush1.xpose.msra.mxu0 0.0
        %412 = vmatprep.mubr.f32.mxu0 %v325
        %413 = vmatmul.mubr.f32.gmra.mrb[0].mxu0 %v324
        %v414 = vpop.f32.mrb[0].mxu0
        %v415 = vadd.f32 0.0, %v414
        %v416 = vpop.f32.mrb[0].mxu0
        %417 = vmatprep.mubr.f32.mxu0 %v327
        %418 = vmatmul.mubr.f32.gmra.mrb[0].mxu0 %v326
        %v419 = vpop.f32.mrb[0].mxu0
        %v420 = vadd.f32 0.0, %v419
        %v421 = vpop.f32.mrb[0].mxu0
        %422 = vmatprep.mubr.f32.mxu0 %v329
        %423 = vmatmul.mubr.f32.gmra.mrb[0].mxu0 %v328
        %v424 = vpop.f32.mrb[0].mxu0
        %v425 = vadd.f32 0.0, %v424
        %v426 = vpop.f32.mrb[0].mxu0
        %427 = vmatprep.mubr.f32.mxu0 %v331
        %428 = vmatmul.mubr.f32.gmra.mrb[0].mxu0 %v330
        %v429 = vpop.f32.mrb[0].mxu0
        %v430 = vadd.f32 0.0, %v429
        %v431 = vpop.f32.mrb[0].mxu0
        %432 = vdwg.mxu0
        %vm433 = vcmask 523264
        %434 = vst.msk [vmem:[%s208] sm:$0xff] %vm433, %v415
        %435 = vst.msk [vmem:[%s208 + $0x8] sm:$0xff] %vm433, %v420
        %436 = vst.msk [vmem:[%s208 + $0x10] sm:$0xff] %vm433, %v425
        %437 = vst.msk [vmem:[%s208 + $0x18] sm:$0xff] %vm433, %v430
        %s438 = smul.u32 4, %s19
        %p439 = scmp.lt.s32.totalorder %s438, 11
        %s440 = scalar_select %p439, %s438, 11
        %s441 = smul.addr %s440, 8
        %s442 = scalar_lea.vmem %s3, %s441
        // Predicated region
        $region41: #{tpu_custom_call.1} parent=31 // pred_check
          %p443 = pneg %p105
        $region42: #{tpu_custom_call.1} parent=31 // pred_check_branch
          %445 = sbr.rel (%p443) target = $region44
        $region43: #{tpu_custom_call.1} parent=31 // pred_region
          %s446 = smul.u32 4, %s19
        $region44: #{tpu_custom_call.1} parent=31 // pred_fallthru
          _
      $region32: #{tpu_custom_call.1} parent=5 // pred_fallthru
        _
      %p447 = scmp.le.s32.totalorder 2, %s14
      // Predicated region
      $region45: #{tpu_custom_call.1} parent=5 // pred_check
        %p448 = pneg %p447
      $region46: #{tpu_custom_call.1} parent=5 // pred_check_branch
        %450 = sbr.rel (%p448) target = $region48
      $region47: #{tpu_custom_call.1} parent=5 // pred_region
        %s451 = ssub.s32 %s14, 2
        // Predicated region
        $region49: #{tpu_custom_call.1} parent=47 // pred_check
          %p452 = pneg %p111
        $region50: #{tpu_custom_call.1} parent=47 // pred_check_branch
          %454 = sbr.rel (%p452) target = $region52
        $region51: #{tpu_custom_call.1} parent=47 // pred_region
          %s455 = smul.u32 4, %s20
          %p456 = scmp.lt.s32.totalorder %s455, 11
          %s457 = scalar_select %p456, %s455, 11
          %s458 = smul.addr %s457, 8
          %s459 = scalar_lea.vmem %s3, %s458
        $region52: #{tpu_custom_call.1} parent=47 // pred_fallthru
          _
      $region48: #{tpu_custom_call.1} parent=5 // pred_fallthru
        _
    $region6: #{tpu_custom_call.1} parent=1 // loop_footer
      %s18 = sadd.s32 1, %s14
    $region7: #{tpu_custom_call.1} parent=1 // loop_footer_branch
      %13 = sbr.rel target = $region3
    $region8: #{tpu_custom_call.1} parent=1 // loop_exit
      _
    %460 = vsyncpa [#allocation4], 1
    %s461 = scalar_lea.sflag [#allocation4], 1
    %462 = vsyncpa %s461, 1
    %463 = vsyncpa [#allocation6], 1

</llo_original>
